<compile_context>
chip_gen: v7x
topology: tpu7x:2x2x1
jax: 0.10.0
libtpu: 0.0.40
codegen_flags: <defaults>
</compile_context>

<pallas_src>
import functools

import jax
import jax.numpy as jnp
from jax.experimental import pallas as pl
from jax.experimental.pallas import tpu as pltpu


def _cdiv(a, b):
    return -(-a // b)


def _round_up(n, m):
    return ((n + m - 1) // m) * m


def _crossnet_kernel(x_ref, bc0_ref, bc1_ref,
                     wc0_ref, wc1_ref,
                     wd0_ref, bd0_ref, wd1_ref, bd1_ref, wd2_ref, bd2_ref,
                     out_ref, *, use_softmax, mxu_dtype):
    f32 = jnp.float32
    x = x_ref[...].astype(f32)                                   # (F, bb)

    # cross layer 0: cross_f1 = x * (w_c0 . x) + b_c0  (rank-1 rewrite of the
    # bmm).  The 1-wide dot is a lane-parallel VPU multiply + sublane reduce
    # (XLU slot), not a degenerate MXU matmul.
    s0 = jnp.sum(x * wc0_ref[...], axis=0, keepdims=True)        # (1, bb)
    cf1 = x * s0 + bc0_ref[0, 0]                                  # (F, bb)

    # cross layer 1: cross_f2 = x * (w_c1 . cross_f1) + b_c1
    s1 = jnp.sum(cf1 * wc1_ref[...], axis=0, keepdims=True)       # (1, bb)
    cf2 = x * s1 + bc1_ref[0, 0]                                  # (F, bb)

    # deep_layer0 on concat([x, cf1, cf2]) without materializing a batch-major
    # concat: stack along sublanes (batch stays lane-dense) and do ONE
    # (2F, 3F) @ (3F, bb) MXU matmul with f32 accumulation.
    stacked = jnp.concatenate([x, cf1, cf2], axis=0).astype(mxu_dtype)
    h1 = jnp.dot(wd0_ref[...], stacked,
                 preferred_element_type=f32) + bd0_ref[...]       # (2F, bb)
    h1 = jnp.maximum(h1, 0.0)

    # deep_layer1 + ReLU
    h2 = jnp.dot(wd1_ref[...], h1.astype(mxu_dtype),
                 preferred_element_type=f32) + bd1_ref[...]       # (F, bb)
    h2 = jnp.maximum(h2, 0.0)

    # deep_layer2 (logits)
    out = jnp.dot(wd2_ref[...], h2.astype(mxu_dtype),
                  preferred_element_type=f32) + bd2_ref[...]      # (C, bb)

    if use_softmax:
        m = jnp.max(out, axis=0, keepdims=True)
        e = jnp.exp(out - m)
        out = e * pl.reciprocal(jnp.sum(e, axis=0, keepdims=True), approx=True)

    out_ref[...] = out.astype(out_ref.dtype)


def cross_net_forward(x, params, *, use_softmax=False, block_b=4096,
                      compute_dtype=jnp.float32):
    """CrossNet forward.  x: (B, in_features).  params use PyTorch (out, in)
    weight layout.  compute_dtype only affects MXU operand format."""
    B, F = x.shape
    C = params["w_d2"].shape[0]
    assert params["w_d0"].shape == (2 * F, 3 * F)

    mxu = jnp.dtype(compute_dtype)
    f32 = jnp.float32

    # Feature-major operands; PyTorch (out, in) weights are used as-is (W @ x).
    x_t = x.T                                              # (F, B), cheap
    wc0 = params["w_c0"].astype(f32).reshape(F, 1)
    wc1 = params["w_c1"].astype(f32).reshape(F, 1)
    bc0 = params["b_c0"].astype(f32).reshape(1, 1)
    bc1 = params["b_c1"].astype(f32).reshape(1, 1)
    wd0 = params["w_d0"].astype(mxu)                       # (2F, 3F)
    wd1 = params["w_d1"].astype(mxu)                       # (F, 2F)
    wd2 = params["w_d2"].astype(mxu)                       # (C, F)
    bd0 = params["b_d0"].astype(f32).reshape(2 * F, 1)
    bd1 = params["b_d1"].astype(f32).reshape(F, 1)
    bd2 = params["b_d2"].astype(f32).reshape(C, 1)

    # Lane-tile choice: multiple of 128, >=2 grid steps when B allows (both
    # v7x TensorCores get work), ragged tail handled by partial final block.
    if B >= 256:
        bb = max(128, _round_up(min(block_b, _cdiv(B, 2)), 128))
    else:
        bb = B                      # single full-extent block for tiny batches
    grid = (_cdiv(B, bb),)

    resident = lambda a: pl.BlockSpec(a.shape, lambda i: (0,) * a.ndim)
    smem = pl.BlockSpec(memory_space=pltpu.MemorySpace.SMEM)

    vmem_weights = (wc0, wc1, wd0, bd0, wd1, bd1, wd2, bd2)

    grid_spec = pltpu.PrefetchScalarGridSpec(
        num_scalar_prefetch=0,
        grid=grid,
        in_specs=[pl.BlockSpec((F, bb), lambda i: (0, i)),   # x streams
                  smem, smem]                                 # scalar biases
                 + [resident(w) for w in vmem_weights],       # VMEM-resident
        out_specs=pl.BlockSpec((C, bb), lambda i: (0, i)),    # lane-dense out
    )

    out_t = pl.pallas_call(
        functools.partial(_crossnet_kernel, use_softmax=use_softmax,
                          mxu_dtype=mxu),
        out_shape=jax.ShapeDtypeStruct((C, B), jnp.float32),
        grid_spec=grid_spec,
        compiler_params=pltpu.CompilerParams(
            dimension_semantics=("parallel",)),   # batch tiles across v7x TCs
    )(x_t, bc0, bc1, *vmem_weights)

    return out_t.T                                            # (B, C)


def init_params(key, in_features, num_classes):
    """Synthetic init matching nn.Linear defaults; PyTorch (out, in) layout."""
    F, C = in_features, num_classes
    ks = jax.random.split(key, 10)

    def lin(kw, kb, out_f, in_f):
        bound = 1.0 / (in_f ** 0.5)
        w = jax.random.uniform(kw, (out_f, in_f), jnp.float32, -bound, bound)
        b = jax.random.uniform(kb, (out_f,), jnp.float32, -bound, bound)
        return w, b

    w_c0, b_c0 = lin(ks[0], ks[1], 1, F)
    w_c1, b_c1 = lin(ks[2], ks[3], 1, F)
    w_d0, b_d0 = lin(ks[4], ks[5], 2 * F, 3 * F)
    w_d1, b_d1 = lin(ks[6], ks[7], F, 2 * F)
    w_d2, b_d2 = lin(ks[8], ks[9], C, F)
    return {"w_c0": w_c0, "b_c0": b_c0, "w_c1": w_c1, "b_c1": b_c1,
            "w_d0": w_d0, "b_d0": b_d0, "w_d1": w_d1, "b_d1": b_d1,
            "w_d2": w_d2, "b_d2": b_d2}


def reference_forward(x, p, use_softmax=False):
    """Op-for-op JAX port of the PyTorch CrossNet forward (f32, HIGHEST)."""
    mm = functools.partial(jnp.matmul, precision=jax.lax.Precision.HIGHEST)
    dx = x[:, :, None]                                        # (B, F, 1)
    cross_x0 = mm(dx, jnp.swapaxes(dx, 1, 2))                 # (B, F, F)
    cross_f1 = mm(cross_x0, p["w_c0"].T) + p["b_c0"]          # (B, F, 1)
    cross_x1 = mm(dx, jnp.swapaxes(cross_f1, 1, 2))           # (B, F, F)
    cross_f2 = mm(cross_x1, p["w_c1"].T) + p["b_c1"]          # (B, F, 1)
    deep_x0 = jnp.concatenate([dx, cross_f1, cross_f2], axis=1)[..., 0]
    h1 = jnp.maximum(mm(deep_x0, p["w_d0"].T) + p["b_d0"], 0.0)
    h2 = jnp.maximum(mm(h1, p["w_d1"].T) + p["b_d1"], 0.0)
    out = mm(h2, p["w_d2"].T) + p["b_d2"]
    if use_softmax:
        out = jax.nn.softmax(out, axis=-1)
    return out


if __name__ == "__main__":
    IN_FEATURES, NUM_CLASSES = 16, 3
    key = jax.random.PRNGKey(0)
    kx1, kx2, kp = jax.random.split(key, 3)
    params = init_params(kp, IN_FEATURES, NUM_CLASSES)

    # 1) Small batch, f32 MXU operands: semantic check vs op-for-op reference.
    x_small = jax.random.normal(kx1, (4, IN_FEATURES), jnp.float32)
    out = jax.block_until_ready(
        cross_net_forward(x_small, params, compute_dtype=jnp.float32))
    ref = reference_forward(x_small, params)
    assert out.shape == (4, NUM_CLASSES)
    assert jnp.allclose(out, ref, atol=1e-2, rtol=1e-2), "f32 path mismatch"

    # 1b) Softmax head (use_softmax=True branch), f32.
    out_sm = jax.block_until_ready(
        cross_net_forward(x_small, params, use_softmax=True,
                          compute_dtype=jnp.float32))
    ref_sm = reference_forward(x_small, params, use_softmax=True)
    assert jnp.allclose(out_sm, ref_sm, atol=1e-2, rtol=1e-2), "softmax mismatch"

    # 2) Larger ragged batch, bf16 MXU operands: exercises >=2 grid steps
    #    (v7x megacore split) + the ragged final lane block, no wrapper pad.
    x_big = jax.random.normal(kx2, (300, IN_FEATURES), jnp.float32)
    out_big = jax.block_until_ready(
        cross_net_forward(x_big, params, compute_dtype=jnp.bfloat16))
    ref_big = reference_forward(x_big, params)
    assert out_big.shape == (300, NUM_CLASSES)
    assert jnp.allclose(out_big, ref_big, atol=5e-2, rtol=5e-2), "bf16 path mismatch"

    print("KERNEL_OK")
</pallas_src>

<mosaic_0001>
module attributes {stable_mosaic.version = 11 : i64} {
  func.func @_crossnet_kernel(%arg0: i32, %arg1: memref<16x4xf32, #tpu.memory_space<vmem>>, %arg2: memref<1x1xf32, #tpu.memory_space<smem>>, %arg3: memref<1x1xf32, #tpu.memory_space<smem>>, %arg4: memref<16x1xf32, #tpu.memory_space<vmem>>, %arg5: memref<16x1xf32, #tpu.memory_space<vmem>>, %arg6: memref<32x48xf32, #tpu.memory_space<vmem>>, %arg7: memref<32x1xf32, #tpu.memory_space<vmem>>, %arg8: memref<16x32xf32, #tpu.memory_space<vmem>>, %arg9: memref<16x1xf32, #tpu.memory_space<vmem>>, %arg10: memref<3x16xf32, #tpu.memory_space<vmem>>, %arg11: memref<3x1xf32, #tpu.memory_space<vmem>>, %arg12: memref<3x4xf32, #tpu.memory_space<vmem>>) attributes {dimension_semantics = [#tpu.dimension_semantics<parallel>], iteration_bounds = array<i64: 1>, scalar_prefetch = 0 : i64, scratch_operands = 0 : i64, tpu.core_type = #tpu.core_type<tc>, window_params = [{transform_indices = @transform_0, window_bounds = array<i64: 16, 4>}, {transform_indices = @transform_1, window_bounds = array<i64: 1, 1>}, {transform_indices = @transform_2, window_bounds = array<i64: 1, 1>}, {pipeline_mode = #tpu.pipeline_mode<synchronous>, transform_indices = @transform_3, window_bounds = array<i64: 16, 1>}, {pipeline_mode = #tpu.pipeline_mode<synchronous>, transform_indices = @transform_4, window_bounds = array<i64: 16, 1>}, {pipeline_mode = #tpu.pipeline_mode<synchronous>, transform_indices = @transform_5, window_bounds = array<i64: 32, 48>}, {pipeline_mode = #tpu.pipeline_mode<synchronous>, transform_indices = @transform_6, window_bounds = array<i64: 32, 1>}, {pipeline_mode = #tpu.pipeline_mode<synchronous>, transform_indices = @transform_7, window_bounds = array<i64: 16, 32>}, {pipeline_mode = #tpu.pipeline_mode<synchronous>, transform_indices = @transform_8, window_bounds = array<i64: 16, 1>}, {pipeline_mode = #tpu.pipeline_mode<synchronous>, transform_indices = @transform_9, window_bounds = array<i64: 3, 16>}, {pipeline_mode = #tpu.pipeline_mode<synchronous>, transform_indices = @transform_10, window_bounds = array<i64: 3, 1>}, {transform_indices = @transform_11, window_bounds = array<i64: 3, 4>}]} {
    %c0 = arith.constant 0 : index
    %c0_0 = arith.constant 0 : index
    %0 = vector.load %arg1[%c0, %c0_0] : memref<16x4xf32, #tpu.memory_space<vmem>>, vector<16x4xf32>
    %c0_1 = arith.constant 0 : index
    %c0_2 = arith.constant 0 : index
    %1 = vector.load %arg4[%c0_1, %c0_2] : memref<16x1xf32, #tpu.memory_space<vmem>>, vector<16x1xf32>
    %2 = vector.broadcast %1 : vector<16x1xf32> to vector<16x4xf32>
    %3 = arith.mulf %0, %2 : vector<16x4xf32>
    %cst = arith.constant dense<0.000000e+00> : vector<4xf32>
    %4 = vector.multi_reduction <add>, %3, %cst [0] : vector<16x4xf32> to vector<4xf32>
    %5 = vector.shape_cast %4 : vector<4xf32> to vector<1x4xf32>
    %6 = vector.broadcast %5 : vector<1x4xf32> to vector<16x4xf32>
    %7 = arith.mulf %0, %6 : vector<16x4xf32>
    %c0_3 = arith.constant 0 : index
    %c0_4 = arith.constant 0 : index
    %8 = memref.load %arg2[%c0_3, %c0_4] : memref<1x1xf32, #tpu.memory_space<smem>>
    %9 = vector.broadcast %8 : f32 to vector<16x4xf32>
    %10 = arith.addf %7, %9 : vector<16x4xf32>
    %c0_5 = arith.constant 0 : index
    %c0_6 = arith.constant 0 : index
    %11 = vector.load %arg5[%c0_5, %c0_6] : memref<16x1xf32, #tpu.memory_space<vmem>>, vector<16x1xf32>
    %12 = vector.broadcast %11 : vector<16x1xf32> to vector<16x4xf32>
    %13 = arith.mulf %10, %12 : vector<16x4xf32>
    %cst_7 = arith.constant dense<0.000000e+00> : vector<4xf32>
    %14 = vector.multi_reduction <add>, %13, %cst_7 [0] : vector<16x4xf32> to vector<4xf32>
    %15 = vector.shape_cast %14 : vector<4xf32> to vector<1x4xf32>
    %16 = vector.broadcast %15 : vector<1x4xf32> to vector<16x4xf32>
    %17 = arith.mulf %0, %16 : vector<16x4xf32>
    %c0_8 = arith.constant 0 : index
    %c0_9 = arith.constant 0 : index
    %18 = memref.load %arg3[%c0_8, %c0_9] : memref<1x1xf32, #tpu.memory_space<smem>>
    %19 = vector.broadcast %18 : f32 to vector<16x4xf32>
    %20 = arith.addf %17, %19 : vector<16x4xf32>
    %21 = tpu.concatenate %0, %10, %20 in 0 : vector<16x4xf32>, vector<16x4xf32>, vector<16x4xf32> -> vector<48x4xf32>
    %c0_10 = arith.constant 0 : index
    %c0_11 = arith.constant 0 : index
    %22 = vector.load %arg6[%c0_10, %c0_11] : memref<32x48xf32, #tpu.memory_space<vmem>>, vector<32x48xf32>
    %cst_12 = arith.constant dense<0.000000e+00> : vector<32x4xf32>
    %23 = tpu.matmul %22, %21, %cst_12 {dimension_numbers = #tpu.dot_dimension_numbers<[1], [0], [0], [1], [0, 0, 1, 1], [], []>} : vector<32x48xf32>, vector<48x4xf32>, vector<32x4xf32> -> vector<32x4xf32>
    %c0_13 = arith.constant 0 : index
    %c0_14 = arith.constant 0 : index
    %24 = vector.load %arg7[%c0_13, %c0_14] : memref<32x1xf32, #tpu.memory_space<vmem>>, vector<32x1xf32>
    %25 = vector.broadcast %24 : vector<32x1xf32> to vector<32x4xf32>
    %26 = arith.addf %23, %25 : vector<32x4xf32>
    %cst_15 = arith.constant 0.000000e+00 : f32
    %27 = vector.broadcast %cst_15 : f32 to vector<32x4xf32>
    %28 = arith.maximumf %26, %27 : vector<32x4xf32>
    %c0_16 = arith.constant 0 : index
    %c0_17 = arith.constant 0 : index
    %29 = vector.load %arg8[%c0_16, %c0_17] : memref<16x32xf32, #tpu.memory_space<vmem>>, vector<16x32xf32>
    %cst_18 = arith.constant dense<0.000000e+00> : vector<16x4xf32>
    %30 = tpu.matmul %29, %28, %cst_18 {dimension_numbers = #tpu.dot_dimension_numbers<[1], [0], [0], [1], [0, 0, 1, 1], [], []>} : vector<16x32xf32>, vector<32x4xf32>, vector<16x4xf32> -> vector<16x4xf32>
    %c0_19 = arith.constant 0 : index
    %c0_20 = arith.constant 0 : index
    %31 = vector.load %arg9[%c0_19, %c0_20] : memref<16x1xf32, #tpu.memory_space<vmem>>, vector<16x1xf32>
    %32 = vector.broadcast %31 : vector<16x1xf32> to vector<16x4xf32>
    %33 = arith.addf %30, %32 : vector<16x4xf32>
    %cst_21 = arith.constant 0.000000e+00 : f32
    %34 = vector.broadcast %cst_21 : f32 to vector<16x4xf32>
    %35 = arith.maximumf %33, %34 : vector<16x4xf32>
    %c0_22 = arith.constant 0 : index
    %c0_23 = arith.constant 0 : index
    %36 = vector.load %arg10[%c0_22, %c0_23] : memref<3x16xf32, #tpu.memory_space<vmem>>, vector<3x16xf32>
    %cst_24 = arith.constant dense<0.000000e+00> : vector<3x4xf32>
    %37 = tpu.matmul %36, %35, %cst_24 {dimension_numbers = #tpu.dot_dimension_numbers<[1], [0], [0], [1], [0, 0, 1, 1], [], []>} : vector<3x16xf32>, vector<16x4xf32>, vector<3x4xf32> -> vector<3x4xf32>
    %c0_25 = arith.constant 0 : index
    %c0_26 = arith.constant 0 : index
    %38 = vector.load %arg11[%c0_25, %c0_26] : memref<3x1xf32, #tpu.memory_space<vmem>>, vector<3x1xf32>
    %39 = vector.broadcast %38 : vector<3x1xf32> to vector<3x4xf32>
    %40 = arith.addf %37, %39 : vector<3x4xf32>
    %c0_27 = arith.constant 0 : index
    %c0_28 = arith.constant 0 : index
    %41 = vector.load %arg12[%c0_27, %c0_28] : memref<3x4xf32, #tpu.memory_space<vmem>>, vector<3x4xf32>
    tpu.vector_store %arg12[%c0_27, %c0_28], %40 {strides = array<i32>} : memref<3x4xf32, #tpu.memory_space<vmem>>, vector<3x4xf32>,
    return
  }
  func.func @transform_0(%arg0: i32) -> (i32, i32) {
    %c0_i32 = arith.constant 0 : i32
    %c0_i32_0 = arith.constant 0 : i32
    return %c0_i32, %arg0 : i32, i32
  }
  func.func @transform_1(%arg0: i32) -> (i32, i32) {
    %c0_i32 = arith.constant 0 : i32
    %c0_i32_0 = arith.constant 0 : i32
    %c0_i32_1 = arith.constant 0 : i32
    return %c0_i32, %c0_i32_0 : i32, i32
  }
  func.func @transform_2(%arg0: i32) -> (i32, i32) {
    %c0_i32 = arith.constant 0 : i32
    %c0_i32_0 = arith.constant 0 : i32
    %c0_i32_1 = arith.constant 0 : i32
    return %c0_i32, %c0_i32_0 : i32, i32
  }
  func.func @transform_3(%arg0: i32) -> (i32, i32) {
    %c0_i32 = arith.constant 0 : i32
    %c0_i32_0 = arith.constant 0 : i32
    %c0_i32_1 = arith.constant 0 : i32
    return %c0_i32, %c0_i32_0 : i32, i32
  }
  func.func @transform_4(%arg0: i32) -> (i32, i32) {
    %c0_i32 = arith.constant 0 : i32
    %c0_i32_0 = arith.constant 0 : i32
    %c0_i32_1 = arith.constant 0 : i32
    return %c0_i32, %c0_i32_0 : i32, i32
  }
  func.func @transform_5(%arg0: i32) -> (i32, i32) {
    %c0_i32 = arith.constant 0 : i32
    %c0_i32_0 = arith.constant 0 : i32
    %c0_i32_1 = arith.constant 0 : i32
    return %c0_i32, %c0_i32_0 : i32, i32
  }
  func.func @transform_6(%arg0: i32) -> (i32, i32) {
    %c0_i32 = arith.constant 0 : i32
    %c0_i32_0 = arith.constant 0 : i32
    %c0_i32_1 = arith.constant 0 : i32
    return %c0_i32, %c0_i32_0 : i32, i32
  }
  func.func @transform_7(%arg0: i32) -> (i32, i32) {
    %c0_i32 = arith.constant 0 : i32
    %c0_i32_0 = arith.constant 0 : i32
    %c0_i32_1 = arith.constant 0 : i32
    return %c0_i32, %c0_i32_0 : i32, i32
  }
  func.func @transform_8(%arg0: i32) -> (i32, i32) {
    %c0_i32 = arith.constant 0 : i32
    %c0_i32_0 = arith.constant 0 : i32
    %c0_i32_1 = arith.constant 0 : i32
    return %c0_i32, %c0_i32_0 : i32, i32
  }
  func.func @transform_9(%arg0: i32) -> (i32, i32) {
    %c0_i32 = arith.constant 0 : i32
    %c0_i32_0 = arith.constant 0 : i32
    %c0_i32_1 = arith.constant 0 : i32
    return %c0_i32, %c0_i32_0 : i32, i32
  }
  func.func @transform_10(%arg0: i32) -> (i32, i32) {
    %c0_i32 = arith.constant 0 : i32
    %c0_i32_0 = arith.constant 0 : i32
    %c0_i32_1 = arith.constant 0 : i32
    return %c0_i32, %c0_i32_0 : i32, i32
  }
  func.func @transform_11(%arg0: i32) -> (i32, i32) {
    %c0_i32 = arith.constant 0 : i32
    %c0_i32_0 = arith.constant 0 : i32
    return %c0_i32, %arg0 : i32, i32
  }
}

</mosaic_0001>

<llo_original>
// kernel: tpu_custom_call.1
$region0: #{tpu_custom_call.1}
  #allocation0 [shape = 'u32[]', space=smem, size = 0x4, offset = 0x4, fixed_abs, tag = 'smem constant byte address 0x4 - core index']
  #allocation1 [shape = 'u32[144,128]{1,0:T(1,128)}', space=vmem, size = 0x12000, scoped, tag = 'internal scratch']
  #allocation2 [shape = 'f32[1,1]{1,0:T(1,128)S(6)}', space=smem, size = 0x200, scoped, tag = 'scoped memory for tpu_custom_call.1']
  #allocation3 [shape = 'f32[1,1]{1,0:T(1,128)S(6)}', space=smem, size = 0x200, scoped, tag = 'scoped memory for tpu_custom_call.1']
  %s0 = inlined_call_operand.vmem [shape: f32[16,4], index: 0, kind: input, shape index: {}]
  %s1 = inlined_call_operand.<no memory space> [shape: f32[1,1], index: 1, kind: input, shape index: {}]
  %s2 = inlined_call_operand.<no memory space> [shape: f32[1,1], index: 2, kind: input, shape index: {}]
  %s3 = inlined_call_operand.vmem [shape: f32[16,1], index: 3, kind: input, shape index: {}]
  %s4 = inlined_call_operand.vmem [shape: f32[16,1], index: 4, kind: input, shape index: {}]
  %s5 = inlined_call_operand.vmem [shape: f32[32,48], index: 5, kind: input, shape index: {}]
  %s6 = inlined_call_operand.vmem [shape: f32[32,1], index: 6, kind: input, shape index: {}]
  %s7 = inlined_call_operand.vmem [shape: f32[16,32], index: 7, kind: input, shape index: {}]
  %s8 = inlined_call_operand.vmem [shape: f32[16,1], index: 8, kind: input, shape index: {}]
  %s9 = inlined_call_operand.vmem [shape: f32[3,16], index: 9, kind: input, shape index: {}]
  %s10 = inlined_call_operand.vmem [shape: f32[3,1], index: 10, kind: input, shape index: {}]
  %s11 = inlined_call_operand.hbm [shape: f32[3,4], index: 11, kind: output, shape index: {}]
  %s12 = sld [smem:[#allocation0]]
  $region54: #{tpu_custom_call.1} parent=0
    _
  %s14 = ssub.s32 1, %s12
  %s15 = scalar_select 0, %s14, %s12
  %16 = sst [smem:[#allocation2]] %s1
  %17 = sst [smem:[#allocation3]] %s2
  $region1: #{tpu_custom_call.1} parent=0
    #allocation4 [shape = 'u8[2048]{0}', space=vmem, size = 0x800, scoped, tag = 'output window, operand 0, single buffered']
    #allocation5 [shape = 's32[1]{0}', space=sflag, size = 0x4, scoped, tag = 'scoped memory for tpu_custom_call.1']
    %18 = vsyncpa [#allocation5], 0
    // Predicated region
    $region2: #{tpu_custom_call.1} parent=1 // pred_check
      _
    $region3: #{tpu_custom_call.1} parent=1 // pred_check_branch
      %20 = sbr.rel (0) target = $region5
    $region4: #{tpu_custom_call.1} parent=1 // pred_region
      _
    $region5: #{tpu_custom_call.1} parent=1 // pred_fallthru
      _
    // Predicated region
    $region6: #{tpu_custom_call.1} parent=1 // pred_check
      _
    $region7: #{tpu_custom_call.1} parent=1 // pred_check_branch
      %22 = sbr.rel (0) target = $region9
    $region8: #{tpu_custom_call.1} parent=1 // pred_region
      _
    $region9: #{tpu_custom_call.1} parent=1 // pred_fallthru
      _
    // Predicated region
    $region10: #{tpu_custom_call.1} parent=1 // pred_check
      _
    $region11: #{tpu_custom_call.1} parent=1 // pred_check_branch
      %24 = sbr.rel (0) target = $region13
    $region12: #{tpu_custom_call.1} parent=1 // pred_region
      _
    $region13: #{tpu_custom_call.1} parent=1 // pred_fallthru
      _
    // Predicated region
    $region14: #{tpu_custom_call.1} parent=1 // pred_check
      _
    $region15: #{tpu_custom_call.1} parent=1 // pred_check_branch
      %26 = sbr.rel (0) target = $region17
    $region16: #{tpu_custom_call.1} parent=1 // pred_region
      _
    $region17: #{tpu_custom_call.1} parent=1 // pred_fallthru
      _
    // Predicated region
    $region18: #{tpu_custom_call.1} parent=1 // pred_check
      _
    $region19: #{tpu_custom_call.1} parent=1 // pred_check_branch
      %28 = sbr.rel (0) target = $region21
    $region20: #{tpu_custom_call.1} parent=1 // pred_region
      _
    $region21: #{tpu_custom_call.1} parent=1 // pred_fallthru
      _
    // Predicated region
    $region22: #{tpu_custom_call.1} parent=1 // pred_check
      _
    $region23: #{tpu_custom_call.1} parent=1 // pred_check_branch
      %30 = sbr.rel (0) target = $region25
    $region24: #{tpu_custom_call.1} parent=1 // pred_region
      _
    $region25: #{tpu_custom_call.1} parent=1 // pred_fallthru
      _
    // Predicated region
    $region26: #{tpu_custom_call.1} parent=1 // pred_check
      _
    $region27: #{tpu_custom_call.1} parent=1 // pred_check_branch
      %32 = sbr.rel (0) target = $region29
    $region28: #{tpu_custom_call.1} parent=1 // pred_region
      _
    $region29: #{tpu_custom_call.1} parent=1 // pred_fallthru
      _
    // Predicated region
    $region30: #{tpu_custom_call.1} parent=1 // pred_check
      _
    $region31: #{tpu_custom_call.1} parent=1 // pred_check_branch
      %34 = sbr.rel (0) target = $region33
    $region32: #{tpu_custom_call.1} parent=1 // pred_region
      _
    $region33: #{tpu_custom_call.1} parent=1 // pred_fallthru
      _
    // Predicated region
    $region34: #{tpu_custom_call.1} parent=1 // pred_check
      _
    $region35: #{tpu_custom_call.1} parent=1 // pred_check_branch
      %36 = sbr.rel (0) target = $region37
    $region36: #{tpu_custom_call.1} parent=1 // pred_region
      _
    $region37: #{tpu_custom_call.1} parent=1 // pred_fallthru
      _
    // Predicated region
    $region38: #{tpu_custom_call.1} parent=1 // pred_check
      _
    $region39: #{tpu_custom_call.1} parent=1 // pred_check_branch
      %38 = sbr.rel (0) target = $region41
    $region40: #{tpu_custom_call.1} parent=1 // pred_region
      _
    $region41: #{tpu_custom_call.1} parent=1 // pred_fallthru
      _
    // Predicated region
    $region42: #{tpu_custom_call.1} parent=1 // pred_check
      _
    $region43: #{tpu_custom_call.1} parent=1 // pred_check_branch
      %40 = sbr.rel (0) target = $region45
    $region44: #{tpu_custom_call.1} parent=1 // pred_region
      _
    $region45: #{tpu_custom_call.1} parent=1 // pred_fallthru
      _
    %v41 = vld [vmem:[%s0] sm:$0xff]
    %v42 = vld [vmem:[%s0 + $0x8] sm:$0xff]
    %v43 = vld [vmem:[%s3] sm:$0xff]
    %v44 = vld [vmem:[%s3 + $0x8] sm:$0xff]
    %46 = vset.pattern.permute.xlu0 0
    %47 = vperm.xlu0 %46, %v43
    %v48 = vpop.permute.xlu0 %47
    %51 = vset.pattern.permute.xlu0 0
    %52 = vperm.xlu0 %51, %v44
    %v53 = vpop.permute.xlu0 %52
    %v55 = vmul.f32 %v41, %v48
    %v56 = vmul.f32 %v42, %v53
    %vm57 = vcmask 31744
    %v58 = vsel %vm57, %v55, 0.0
    %v59 = vsel %vm57, %v56, 0.0
    %v60 = vadd.f32 %v58, %v59
    %v61 = vrot.slane %v60, 4
    %v62 = vadd.f32 %v60, %v61
    %v63 = vrot.slane %v62, 2
    %v64 = vadd.f32 %v62, %v63
    %v65 = vrot.slane %v64, 1
    %v66 = vadd.f32 %v64, %v65
    %v67 = vmul.f32 %v41, %v66
    %v68 = vmul.f32 %v42, %v66
    %s69 = sld [smem:[#allocation2]]
    %v70 = vstv %s69
    %v71 = vadd.f32 %v67, %v70
    %v72 = vadd.f32 %v68, %v70
    %v73 = vld [vmem:[%s4] sm:$0xff]
    %v74 = vld [vmem:[%s4 + $0x8] sm:$0xff]
    %76 = vset.pattern.permute.xlu0 0
    %77 = vperm.xlu0 %76, %v73
    %v78 = vpop.permute.xlu0 %77
    %81 = vset.pattern.permute.xlu0 0
    %82 = vperm.xlu0 %81, %v74
    %v83 = vpop.permute.xlu0 %82
    %v85 = vmul.f32 %v71, %v78
    %v86 = vmul.f32 %v72, %v83
    %v87 = vsel %vm57, %v85, 0.0
    %v88 = vsel %vm57, %v86, 0.0
    %v89 = vadd.f32 %v87, %v88
    %v90 = vrot.slane %v89, 4
    %v91 = vadd.f32 %v89, %v90
    %v92 = vrot.slane %v91, 2
    %v93 = vadd.f32 %v91, %v92
    %v94 = vrot.slane %v93, 1
    %v95 = vadd.f32 %v93, %v94
    %v96 = vmul.f32 %v41, %v95
    %v97 = vmul.f32 %v42, %v95
    %s98 = sld [smem:[#allocation3]]
    %v99 = vstv %s98
    %v100 = vadd.f32 %v96, %v99
    %v101 = vadd.f32 %v97, %v99
    %v102 = vld [vmem:[%s5] sm:$0xff]
    %v103 = vld [vmem:[%s5 + $0x8] sm:$0xff]
    %v104 = vld [vmem:[%s5 + $0x10] sm:$0xff]
    %v105 = vld [vmem:[%s5 + $0x18] sm:$0xff]
    %v106 = vld [vmem:[%s6] sm:$0xff]
    %v107 = vld [vmem:[%s6 + $0x8] sm:$0xff]
    %v108 = vld [vmem:[%s6 + $0x10] sm:$0xff]
    %v109 = vld [vmem:[%s6 + $0x18] sm:$0xff]
    %111 = vset.pattern.permute.xlu0 0
    %112 = vperm.xlu0 %111, %v106
    %v113 = vpop.permute.xlu0 %112
    %116 = vset.pattern.permute.xlu0 0
    %117 = vperm.xlu0 %116, %v107
    %v118 = vpop.permute.xlu0 %117
    %121 = vset.pattern.permute.xlu0 0
    %122 = vperm.xlu0 %121, %v108
    %v123 = vpop.permute.xlu0 %122
    %126 = vset.pattern.permute.xlu0 0
    %127 = vperm.xlu0 %126, %v109
    %v128 = vpop.permute.xlu0 %127
    %vm130 = vcmask 392192
    %v132 = vsel %vm130, %v102, 0
    %v135 = vsel %vm130, %v103, 0
    %v138 = vsel %vm130, %v104, 0
    %v141 = vsel %vm130, %v105, 0
    %143 = vmatprep.subr.mxu0 0.0
    %144 = vmatpush1.msra.mxu0 %v41
    %145 = vmatprep.subr.mxu0 0.0
    %146 = vmatpush1.msra.mxu0 %v42
    %147 = vmatprep.subr.mxu0 0.0
    %148 = vmatpush1.msra.mxu0 %v71
    %149 = vmatprep.subr.mxu0 0.0
    %150 = vmatpush1.msra.mxu0 %v72
    %151 = vmatprep.subr.mxu0 0.0
    %152 = vmatpush1.msra.mxu0 %v100
    %153 = vmatprep.subr.mxu0 0.0
    %154 = vmatpush1.msra.mxu0 %v101
    %155 = vmatprep.subr.mxu0 0.0
    %156 = vmatpush1.msra.mxu0 0.0
    %157 = vmatprep.subr.mxu0 0.0
    %158 = vmatpush1.msra.mxu0 0.0
    %159 = vmatprep.subr.mxu0 0.0
    %160 = vmatpush1.msra.mxu0 0.0
    %161 = vmatprep.subr.mxu0 0.0
    %162 = vmatpush1.msra.mxu0 0.0
    %163 = vmatprep.subr.mxu0 0.0
    %164 = vmatpush1.msra.mxu0 0.0
    %165 = vmatprep.subr.mxu0 0.0
    %166 = vmatpush1.msra.mxu0 0.0
    %167 = vmatprep.subr.mxu0 0.0
    %168 = vmatpush1.msra.mxu0 0.0
    %169 = vmatprep.subr.mxu0 0.0
    %170 = vmatpush1.msra.mxu0 0.0
    %171 = vmatprep.subr.mxu0 0.0
    %172 = vmatpush1.msra.mxu0 0.0
    %173 = vmatprep.subr.mxu0 0.0
    %174 = vmatpush1.msra.mxu0 0.0
    %175 = vmatprep.subr.mxu0 0.0
    %176 = vmatpush1.msra.mxu0 0.0
    %177 = vmatprep.subr.mxu0 0.0
    %178 = vmatpush1.msra.mxu0 0.0
    %179 = vmatprep.subr.mxu0 0.0
    %180 = vmatpush1.msra.mxu0 0.0
    %181 = vmatprep.subr.mxu0 0.0
    %182 = vmatpush1.msra.mxu0 0.0
    %183 = vmatprep.subr.mxu0 0.0
    %184 = vmatpush1.msra.mxu0 0.0
    %185 = vmatprep.subr.mxu0 0.0
    %186 = vmatpush1.msra.mxu0 0.0
    %187 = vmatprep.subr.mxu0 0.0
    %188 = vmatpush1.msra.mxu0 0.0
    %189 = vmatprep.subr.mxu0 0.0
    %190 = vmatpush1.msra.mxu0 0.0
    %191 = vmatprep.subr.mxu0 0.0
    %192 = vmatpush1.msra.mxu0 0.0
    %193 = vmatprep.subr.mxu0 0.0
    %194 = vmatpush1.msra.mxu0 0.0
    %195 = vmatprep.subr.mxu0 0.0
    %196 = vmatpush1.msra.mxu0 0.0
    %197 = vmatprep.subr.mxu0 0.0
    %198 = vmatpush1.msra.mxu0 0.0
    %199 = vmatprep.subr.mxu0 0.0
    %200 = vmatpush1.msra.mxu0 0.0
    %201 = vmatprep.subr.mxu0 0.0
    %202 = vmatpush1.msra.mxu0 0.0
    %203 = vmatprep.subr.mxu0 0.0
    %204 = vmatpush1.msra.mxu0 0.0
    %205 = vmatprep.subr.mxu0 0.0
    %206 = vmatpush1.msra.mxu0 0.0
    %207 = vmatprep.mubr.f32.mxu0 0.0
    %208 = vmatmul.mubr.f32.gmra.mrb[0].mxu0 %v132
    %v209 = vpop.f32.mrb[0].mxu0
    %v210 = vadd.f32 %v113, %v209
    %v211 = vpop.f32.mrb[0].mxu0
    %212 = vmatprep.mubr.f32.mxu0 0.0
    %213 = vmatmul.mubr.f32.gmra.mrb[0].mxu0 %v135
    %v214 = vpop.f32.mrb[0].mxu0
    %v215 = vadd.f32 %v118, %v214
    %v216 = vpop.f32.mrb[0].mxu0
    %217 = vmatprep.mubr.f32.mxu0 0.0
    %218 = vmatmul.mubr.f32.gmra.mrb[0].mxu0 %v138
    %v219 = vpop.f32.mrb[0].mxu0
    %v220 = vadd.f32 %v123, %v219
    %v221 = vpop.f32.mrb[0].mxu0
    %222 = vmatprep.mubr.f32.mxu0 0.0
    %223 = vmatmul.mubr.f32.gmra.mrb[0].mxu0 %v141
    %v224 = vpop.f32.mrb[0].mxu0
    %v225 = vadd.f32 %v128, %v224
    %v226 = vpop.f32.mrb[0].mxu0
    %227 = vdwg.mxu0
    %v228 = vmax.f32 %v210, 0.0
    %v229 = vmax.f32 %v215, 0.0
    %v230 = vmax.f32 %v220, 0.0
    %v231 = vmax.f32 %v225, 0.0
    %v232 = vld [vmem:[%s7] sm:$0xff]
    %v233 = vld [vmem:[%s7 + $0x8] sm:$0xff]
    %v234 = vld [vmem:[%s8] sm:$0xff]
    %v235 = vld [vmem:[%s8 + $0x8] sm:$0xff]
    %237 = vset.pattern.permute.xlu0 0
    %238 = vperm.xlu0 %237, %v234
    %v239 = vpop.permute.xlu0 %238
    %242 = vset.pattern.permute.xlu0 0
    %243 = vperm.xlu0 %242, %v235
    %v244 = vpop.permute.xlu0 %243
    %vm246 = vcmask 261120
    %v248 = vsel %vm246, %v232, 0
    %v251 = vsel %vm246, %v233, 0
    %253 = vmatprep.subr.mxu0 0.0
    %254 = vmatpush1.msra.mxu0 %v228
    %255 = vmatprep.subr.mxu0 0.0
    %256 = vmatpush1.msra.mxu0 %v229
    %257 = vmatprep.subr.mxu0 0.0
    %258 = vmatpush1.msra.mxu0 %v230
    %259 = vmatprep.subr.mxu0 0.0
    %260 = vmatpush1.msra.mxu0 %v231
    %261 = vmatprep.subr.mxu0 0.0
    %262 = vmatpush1.msra.mxu0 0.0
    %263 = vmatprep.subr.mxu0 0.0
    %264 = vmatpush1.msra.mxu0 0.0
    %265 = vmatprep.subr.mxu0 0.0
    %266 = vmatpush1.msra.mxu0 0.0
    %267 = vmatprep.subr.mxu0 0.0
    %268 = vmatpush1.msra.mxu0 0.0
    %269 = vmatprep.subr.mxu0 0.0
    %270 = vmatpush1.msra.mxu0 0.0
    %271 = vmatprep.subr.mxu0 0.0
    %272 = vmatpush1.msra.mxu0 0.0
    %273 = vmatprep.subr.mxu0 0.0
    %274 = vmatpush1.msra.mxu0 0.0
    %275 = vmatprep.subr.mxu0 0.0
    %276 = vmatpush1.msra.mxu0 0.0
    %277 = vmatprep.subr.mxu0 0.0
    %278 = vmatpush1.msra.mxu0 0.0
    %279 = vmatprep.subr.mxu0 0.0
    %280 = vmatpush1.msra.mxu0 0.0
    %281 = vmatprep.subr.mxu0 0.0
    %282 = vmatpush1.msra.mxu0 0.0
    %283 = vmatprep.subr.mxu0 0.0
    %284 = vmatpush1.msra.mxu0 0.0
    %285 = vmatprep.subr.mxu0 0.0
    %286 = vmatpush1.msra.mxu0 0.0
    %287 = vmatprep.subr.mxu0 0.0
    %288 = vmatpush1.msra.mxu0 0.0
    %289 = vmatprep.subr.mxu0 0.0
    %290 = vmatpush1.msra.mxu0 0.0
    %291 = vmatprep.subr.mxu0 0.0
    %292 = vmatpush1.msra.mxu0 0.0
    %293 = vmatprep.subr.mxu0 0.0
    %294 = vmatpush1.msra.mxu0 0.0
    %295 = vmatprep.subr.mxu0 0.0
    %296 = vmatpush1.msra.mxu0 0.0
    %297 = vmatprep.subr.mxu0 0.0
    %298 = vmatpush1.msra.mxu0 0.0
    %299 = vmatprep.subr.mxu0 0.0
    %300 = vmatpush1.msra.mxu0 0.0
    %301 = vmatprep.subr.mxu0 0.0
    %302 = vmatpush1.msra.mxu0 0.0
    %303 = vmatprep.subr.mxu0 0.0
    %304 = vmatpush1.msra.mxu0 0.0
    %305 = vmatprep.subr.mxu0 0.0
    %306 = vmatpush1.msra.mxu0 0.0
    %307 = vmatprep.subr.mxu0 0.0
    %308 = vmatpush1.msra.mxu0 0.0
    %309 = vmatprep.subr.mxu0 0.0
    %310 = vmatpush1.msra.mxu0 0.0
    %311 = vmatprep.subr.mxu0 0.0
    %312 = vmatpush1.msra.mxu0 0.0
    %313 = vmatprep.subr.mxu0 0.0
    %314 = vmatpush1.msra.mxu0 0.0
    %315 = vmatprep.subr.mxu0 0.0
    %316 = vmatpush1.msra.mxu0 0.0
    %317 = vmatprep.mubr.f32.mxu0 0.0
    %318 = vmatmul.mubr.f32.gmra.mrb[0].mxu0 %v248
    %v319 = vpop.f32.mrb[0].mxu0
    %v320 = vadd.f32 %v239, %v319
    %v321 = vpop.f32.mrb[0].mxu0
    %322 = vmatprep.mubr.f32.mxu0 0.0
    %323 = vmatmul.mubr.f32.gmra.mrb[0].mxu0 %v251
    %v324 = vpop.f32.mrb[0].mxu0
    %v325 = vadd.f32 %v244, %v324
    %v326 = vpop.f32.mrb[0].mxu0
    %327 = vdwg.mxu0
    %v328 = vmax.f32 %v320, 0.0
    %v329 = vmax.f32 %v325, 0.0
    %v330 = vld [vmem:[%s9] sm:$0x7]
    %v331 = vld [vmem:[%s10] sm:$0x7]
    %333 = vset.pattern.permute.xlu0 0
    %334 = vperm.xlu0 %333, %v331
    %v335 = vpop.permute.xlu0 %334
    %vm337 = vcmask 130048
    %v339 = vsel %vm337, %v330, 0
    %341 = vmatprep.subr.mxu0 0.0
    %342 = vmatpush1.msra.mxu0 %v328
    %343 = vmatprep.subr.mxu0 0.0
    %344 = vmatpush1.msra.mxu0 %v329
    %345 = vmatprep.subr.mxu0 0.0
    %346 = vmatpush1.msra.mxu0 0.0
    %347 = vmatprep.subr.mxu0 0.0
    %348 = vmatpush1.msra.mxu0 0.0
    %349 = vmatprep.subr.mxu0 0.0
    %350 = vmatpush1.msra.mxu0 0.0
    %351 = vmatprep.subr.mxu0 0.0
    %352 = vmatpush1.msra.mxu0 0.0
    %353 = vmatprep.subr.mxu0 0.0
    %354 = vmatpush1.msra.mxu0 0.0
    %355 = vmatprep.subr.mxu0 0.0
    %356 = vmatpush1.msra.mxu0 0.0
    %357 = vmatprep.subr.mxu0 0.0
    %358 = vmatpush1.msra.mxu0 0.0
    %359 = vmatprep.subr.mxu0 0.0
    %360 = vmatpush1.msra.mxu0 0.0
    %361 = vmatprep.subr.mxu0 0.0
    %362 = vmatpush1.msra.mxu0 0.0
    %363 = vmatprep.subr.mxu0 0.0
    %364 = vmatpush1.msra.mxu0 0.0
    %365 = vmatprep.subr.mxu0 0.0
    %366 = vmatpush1.msra.mxu0 0.0
    %367 = vmatprep.subr.mxu0 0.0
    %368 = vmatpush1.msra.mxu0 0.0
    %369 = vmatprep.subr.mxu0 0.0
    %370 = vmatpush1.msra.mxu0 0.0
    %371 = vmatprep.subr.mxu0 0.0
    %372 = vmatpush1.msra.mxu0 0.0
    %373 = vmatprep.subr.mxu0 0.0
    %374 = vmatpush1.msra.mxu0 0.0
    %375 = vmatprep.subr.mxu0 0.0
    %376 = vmatpush1.msra.mxu0 0.0
    %377 = vmatprep.subr.mxu0 0.0
    %378 = vmatpush1.msra.mxu0 0.0
    %379 = vmatprep.subr.mxu0 0.0
    %380 = vmatpush1.msra.mxu0 0.0
    %381 = vmatprep.subr.mxu0 0.0
    %382 = vmatpush1.msra.mxu0 0.0
    %383 = vmatprep.subr.mxu0 0.0
    %384 = vmatpush1.msra.mxu0 0.0
    %385 = vmatprep.subr.mxu0 0.0
    %386 = vmatpush1.msra.mxu0 0.0
    %387 = vmatprep.subr.mxu0 0.0
    %388 = vmatpush1.msra.mxu0 0.0
    %389 = vmatprep.subr.mxu0 0.0
    %390 = vmatpush1.msra.mxu0 0.0
    %391 = vmatprep.subr.mxu0 0.0
    %392 = vmatpush1.msra.mxu0 0.0
    %393 = vmatprep.subr.mxu0 0.0
    %394 = vmatpush1.msra.mxu0 0.0
    %395 = vmatprep.subr.mxu0 0.0
    %396 = vmatpush1.msra.mxu0 0.0
    %397 = vmatprep.subr.mxu0 0.0
    %398 = vmatpush1.msra.mxu0 0.0
    %399 = vmatprep.subr.mxu0 0.0
    %400 = vmatpush1.msra.mxu0 0.0
    %401 = vmatprep.subr.mxu0 0.0
    %402 = vmatpush1.msra.mxu0 0.0
    %403 = vmatprep.subr.mxu0 0.0
    %404 = vmatpush1.msra.mxu0 0.0
    %405 = vmatprep.mubr.f32.mxu0 0.0
    %406 = vmatmul.mubr.f32.gmra.mrb[0].mxu0 %v339
    %v407 = vpop.f32.mrb[0].mxu0
    %v408 = vadd.f32 %v335, %v407
    %v409 = vpop.f32.mrb[0].mxu0
    %410 = vdwg.mxu0
    %vm411 = vcmask 26624
    %412 = vst.msk [vmem:[#allocation4] sm:$0x7] %vm411, %v408
    // Predicated region
    $region46: #{tpu_custom_call.1} parent=1 // pred_check
      _
    $region47: #{tpu_custom_call.1} parent=1 // pred_check_branch
      %414 = sbr.rel (0) target = $region49
    $region48: #{tpu_custom_call.1} parent=1 // pred_region
      %s416 = ssub.s32 64, 64
      %417 = vsyncadd [#allocation5], %s416
      %s419 = sshll.u32 [#allocation4], 4
      %s420 = int_to_ptr.vmem [resolvable:$true] %s419
      %422 = dma.vmem_to_hbm [thread:$0]  %s420, 64, %s11, [#allocation5]
    $region49: #{tpu_custom_call.1} parent=1 // pred_fallthru
      _
    // Predicated region
    $region50: #{tpu_custom_call.1} parent=1 // pred_check
      _
    $region51: #{tpu_custom_call.1} parent=1 // pred_check_branch
      %424 = sbr.rel (0) target = $region53
    $region52: #{tpu_custom_call.1} parent=1 // pred_region
      %425 = dma.done [#allocation5], 64
    $region53: #{tpu_custom_call.1} parent=1 // pred_fallthru
      _
    %426 = vsyncpa [#allocation5], 1

</llo_original>
